<compile_context>
chip_gen: v7x
topology: tpu7x:2x2x1
jax: 0.10.0
libtpu: 0.0.40
codegen_flags: <defaults>
</compile_context>

<pallas_src>
import functools
import math

import jax
import jax.numpy as jnp
from jax import lax
from jax.experimental import pallas as pl
from jax.experimental.pallas import tpu as pltpu


# ---------------------------------------------------------------------------
# autopad — verbatim semantics from the PyTorch module
# ---------------------------------------------------------------------------
def autopad(k, p=None, d=1):
    if d > 1:
        k = d * (k - 1) + 1 if isinstance(k, int) else [d * (x - 1) + 1 for x in k]
    if p is None:
        p = k // 2 if isinstance(k, int) else [x // 2 for x in k]
    return p


def _round_up(x, m):
    return (x + m - 1) // m * m


# ---------------------------------------------------------------------------
# Pallas kernel: one group of `ipb` images per grid step.
#   x_ref : (ipb, C1, HW)        input, spatial flattened onto lanes (bf16/f32)
#   w_ref : (C2, KK*C1_pad)      BN-folded weight, taps stacked on the K axis
#   b_ref : (C2, 1)              BN-folded bias (f32)
#   m_ref : (KK, HW)             0/1 per-tap validity masks (zero padding), f32
#   o_ref : (ipb, C2, HW)        output (f32), lane-dense (HW multiple of 128)
#   col_ref: (KK*C1_pad, ipb*HW) f32 VMEM scratch — in-VMEM im2col
# ---------------------------------------------------------------------------
def conv_kernel(x_ref, w_ref, b_ref, m_ref, o_ref, col_ref, *,
                k, img_w, hw, c1, c1_pad, ipb):
    p = k // 2

    # Zero once per step so the (c1_pad - c1) padding rows of the stacked
    # contraction can't pick up NaN/Inf garbage from uninitialized VMEM
    # (the matching weight columns are zero, but 0 * NaN = NaN).
    if c1_pad != c1:
        col_ref[...] = jnp.zeros_like(col_ref)

    # Build the in-VMEM im2col: one (c1, hw) shifted+masked tap per (image, tap).
    # Row offsets (t*c1_pad) are multiples of 8, lane offsets (b*hw) multiples of
    # 128 -> plain aligned stores.
    for b in range(ipb):
        xb = x_ref[b].astype(jnp.float32)                  # (c1, hw)
        for u in range(k):
            for v in range(k):
                du, dv = u - p, v - p
                t = u * k + v
                if du == 0 and dv == 0:
                    xs = xb                                 # centre tap, in-bounds
                else:
                    s = du * img_w + dv
                    # xs[:, n] = xb[:, (n + s) % hw]  (== jnp.roll(xb, -s, -1)),
                    # XLU lane rotate; the mask zeroes out-of-image positions so
                    # the circular wrap is harmless.
                    xs = pltpu.roll(xb, (-s) % hw, axis=1)
                    xs = xs * m_ref[pl.ds(t, 1), :]         # (1, hw) broadcast
                col_ref[pl.ds(t * c1_pad, c1), pl.ds(b * hw, hw)] = xs

    # ONE stacked contraction on the MXU: (C2, KK*C1p) @ (KK*C1p, ipb*HW),
    # operands in w_ref.dtype (bf16 recommended), accumulation in f32.
    col = col_ref[...].astype(w_ref.dtype)
    acc = jnp.dot(w_ref[...], col, preferred_element_type=jnp.float32)

    z = acc + b_ref[...]                                    # (C2,1) bias broadcast
    z = z * jax.nn.sigmoid(z)                               # SiLU on VPU/EUP (f32)
    for b in range(ipb):                                    # lane-dense 256-wide vst
        o_ref[b] = z[:, b * hw:(b + 1) * hw].astype(o_ref.dtype)


# ---------------------------------------------------------------------------
# Host-side helpers
# ---------------------------------------------------------------------------
def _make_shift_masks(H, W, k):
    """(k*k, H*W) f32 masks: 1 where the shifted source pixel is inside the image."""
    p = k // 2
    rows = jnp.arange(H)[:, None]
    cols = jnp.arange(W)[None, :]
    ms = []
    for u in range(k):
        for v in range(k):
            du, dv = u - p, v - p
            ok = ((rows + du >= 0) & (rows + du < H) &
                  (cols + dv >= 0) & (cols + dv < W))
            ms.append(ok.reshape(H * W))
    return jnp.stack(ms, axis=0).astype(jnp.float32)


def conv_forward(x_nchw, params, *, k=1, s=1, p=None, g=1, d=1,
                 images_per_block=None, operand_dtype=jnp.bfloat16):
    """Forward of Conv: SiLU(BN(Conv2d(x))) with BN folded (inference)."""
    if s != 1 or g != 1 or d != 1 or (k % 2) != 1:
        # TODO(synk): stride>1, grouped and dilated conv paths not implemented.
        raise NotImplementedError("only k odd, s=1, g=1, d=1 supported")
    pad = autopad(k, p, d)
    if pad != k // 2:
        raise NotImplementedError("only 'same' padding (autopad) supported")

    w_pack, b_pack = params                 # (C2, KK*C1_pad) f32, (C2, 1) f32
    B, C1, H, W = x_nchw.shape
    HW = H * W                              # multiple of 128 -> unmasked stores
    KK = k * k
    C1p = _round_up(C1, 8)
    C2 = w_pack.shape[0]
    assert w_pack.shape[1] == KK * C1p

    if images_per_block is None:
        images_per_block = 1                # grid=(B,) "parallel" (v7x: 2 TCs)
    if B % images_per_block != 0:
        raise ValueError("images_per_block must divide the batch")
    ipb = images_per_block
    nb = B // ipb

    x = x_nchw.reshape(B, C1, HW).astype(operand_dtype)    # free reshape + cast
    w2 = w_pack.astype(operand_dtype)
    masks = _make_shift_masks(H, W, k)

    out = pl.pallas_call(
        functools.partial(conv_kernel, k=k, img_w=W, hw=HW,
                          c1=C1, c1_pad=C1p, ipb=ipb),
        out_shape=jax.ShapeDtypeStruct((B, C2, HW), jnp.float32),
        grid_spec=pltpu.PrefetchScalarGridSpec(
            num_scalar_prefetch=0,
            grid=(nb,),
            in_specs=[
                pl.BlockSpec((ipb, C1, HW), lambda i: (i, 0, 0)),
                pl.BlockSpec((C2, KK * C1p), lambda i: (0, 0)),
                pl.BlockSpec((C2, 1), lambda i: (0, 0)),
                pl.BlockSpec((KK, HW), lambda i: (0, 0)),
            ],
            out_specs=pl.BlockSpec((ipb, C2, HW), lambda i: (i, 0, 0)),
            scratch_shapes=[pltpu.VMEM((KK * C1p, ipb * HW), jnp.float32)],
        ),
        compiler_params=pltpu.CompilerParams(
            dimension_semantics=("parallel",),
            vmem_limit_bytes=32 * 1024 * 1024,     # within v7x 64 MiB VMEM
        ),
    )(x, w2, b_pack, masks)

    return out.reshape(B, C2, H, W)         # free reshape back to NCHW


# ---------------------------------------------------------------------------
# Deterministic parameters: Conv2d weight + BatchNorm2d stats, BN folded.
# Packs the weight as (C2, KK*C1_pad) with column index t*C1_pad + c1, t=u*k+v,
# zero columns for the C1 padding rows of the im2col scratch.
# ---------------------------------------------------------------------------
def make_conv_params(key, c1, c2, k=1, eps=1e-3):
    kw, kg, kb, km, kv = jax.random.split(key, 5)
    w = jax.random.normal(kw, (c2, c1, k, k), jnp.float32) / math.sqrt(c1 * k * k)
    gamma = 1.0 + 0.1 * jax.random.normal(kg, (c2,), jnp.float32)
    beta = 0.1 * jax.random.normal(kb, (c2,), jnp.float32)
    mean = 0.1 * jax.random.normal(km, (c2,), jnp.float32)
    var = jnp.abs(jax.random.normal(kv, (c2,), jnp.float32)) + 0.5
    scale = gamma / jnp.sqrt(var + eps)
    w_folded = w * scale[:, None, None, None]               # (C2, C1, k, k)
    b_folded = beta - mean * scale                          # (C2,)

    c1p = _round_up(c1, 8)
    # (C2,C1,k,k) -> (k,k,C2,C1) -> (KK,C2,C1) -> pad C1 -> (C2, KK*C1p)
    w_kkc = jnp.transpose(w_folded, (2, 3, 0, 1)).reshape(k * k, c2, c1)
    w_kkc = jnp.pad(w_kkc, ((0, 0), (0, 0), (0, c1p - c1)))
    w_pack = jnp.transpose(w_kkc, (1, 0, 2)).reshape(c2, k * k * c1p)
    b_pack = b_folded.reshape(c2, 1).astype(jnp.float32)
    return (w_pack, b_pack), (w_folded, b_folded)


# ---------------------------------------------------------------------------
# Pure-JAX reference (conv + folded BN + SiLU) for correctness checks
# ---------------------------------------------------------------------------
def conv_ref(x_nchw, w_folded, b_folded, *, k=1, s=1, p=None, g=1, d=1):
    pad = autopad(k, p, d)
    y = lax.conv_general_dilated(
        x_nchw, w_folded, window_strides=(s, s),
        padding=[(pad, pad), (pad, pad)],
        rhs_dilation=(d, d),
        dimension_numbers=("NCHW", "OIHW", "NCHW"),
        feature_group_count=g,
        precision=lax.Precision.HIGHEST)
    y = y + b_folded.reshape(1, -1, 1, 1)
    return y * jax.nn.sigmoid(y)


# ---------------------------------------------------------------------------
if __name__ == "__main__":
    key = jax.random.PRNGKey(0)
    kx, kp1, kp3 = jax.random.split(key, 3)

    B, C1, H, W = 2, 4, 16, 16      # NCHW, matches nn.Conv2d convention
    C2 = 8

    x = jax.random.normal(kx, (B, C1, H, W), jnp.float32)

    # k=1 (Conv() default): bf16 operands, whole batch in ONE grid step
    # (amortizes per-step overhead on single-TC v5e/v6e).
    (w1p, b1p), (w1, b1) = make_conv_params(kp1, C1, C2, k=1)
    out1 = jax.block_until_ready(conv_forward(x, (w1p, b1p), k=1,
                                              images_per_block=B))
    ref1 = conv_ref(x, w1, b1, k=1)
    assert out1.shape == (B, C2, H, W), out1.shape
    assert jnp.allclose(out1, ref1, rtol=3e-2, atol=3e-2), float(
        jnp.max(jnp.abs(out1 - ref1)))

    # k=3 (most common backbone config): bf16 operands, one image per grid step
    # so the grid keeps a 'parallel' axis with >=2 iterations (both v7x TCs work).
    (w3p, b3p), (w3, b3) = make_conv_params(kp3, C1, C2, k=3)
    out3 = jax.block_until_ready(conv_forward(x, (w3p, b3p), k=3,
                                              images_per_block=1))
    ref3 = conv_ref(x, w3, b3, k=3)
    assert out3.shape == (B, C2, H, W), out3.shape
    assert jnp.allclose(out3, ref3, rtol=3e-2, atol=3e-2), float(
        jnp.max(jnp.abs(out3 - ref3)))

    # k=3 with f32 operands: tight-tolerance check of the im2col / roll / mask path.
    out3f = jax.block_until_ready(conv_forward(x, (w3p, b3p), k=3,
                                               operand_dtype=jnp.float32))
    assert jnp.allclose(out3f, ref3, rtol=2e-3, atol=2e-3), float(
        jnp.max(jnp.abs(out3f - ref3)))

    print("KERNEL_OK")
</pallas_src>

<mosaic_0001>
module attributes {stable_mosaic.version = 11 : i64} {
  func.func @conv_kernel(%arg0: i32, %arg1: memref<2x4x256xbf16, #tpu.memory_space<vmem>>, %arg2: memref<8x8xbf16, #tpu.memory_space<vmem>>, %arg3: memref<8x1xf32, #tpu.memory_space<vmem>>, %arg4: memref<1x256xf32, #tpu.memory_space<vmem>>, %arg5: memref<2x8x256xf32, #tpu.memory_space<vmem>>, %arg6: memref<8x512xf32, #tpu.memory_space<vmem>>) attributes {dimension_semantics = [#tpu.dimension_semantics<parallel>], iteration_bounds = array<i64: 1>, scalar_prefetch = 0 : i64, scratch_operands = 1 : i64, tpu.core_type = #tpu.core_type<tc>, window_params = [{transform_indices = @transform_0, window_bounds = array<i64: 2, 4, 256>}, {pipeline_mode = #tpu.pipeline_mode<synchronous>, transform_indices = @transform_1, window_bounds = array<i64: 8, 8>}, {pipeline_mode = #tpu.pipeline_mode<synchronous>, transform_indices = @transform_2, window_bounds = array<i64: 8, 1>}, {pipeline_mode = #tpu.pipeline_mode<synchronous>, transform_indices = @transform_3, window_bounds = array<i64: 1, 256>}, {transform_indices = @transform_4, window_bounds = array<i64: 2, 8, 256>}]} {
    %cst = arith.constant 0.000000e+00 : f32
    %0 = vector.broadcast %cst : f32 to vector<8x512xf32>
    %c0 = arith.constant 0 : index
    %c0_0 = arith.constant 0 : index
    %1 = vector.load %arg6[%c0, %c0_0] : memref<8x512xf32, #tpu.memory_space<vmem>>, vector<8x512xf32>
    tpu.vector_store %arg6[%c0, %c0_0], %0 {strides = array<i32>} : memref<8x512xf32, #tpu.memory_space<vmem>>, vector<8x512xf32>,
    %c0_1 = arith.constant 0 : index
    %c0_2 = arith.constant 0 : index
    %c0_3 = arith.constant 0 : index
    %2 = vector.load %arg1[%c0_1, %c0_2, %c0_3] : memref<2x4x256xbf16, #tpu.memory_space<vmem>>, vector<1x4x256xbf16>
    %3 = vector.shape_cast %2 : vector<1x4x256xbf16> to vector<4x256xbf16>
    %4 = arith.extf %3 : vector<4x256xbf16> to vector<4x256xf32>
    %c0_4 = arith.constant 0 : index
    %c0_5 = arith.constant 0 : index
    %5 = vector.load %arg6[%c0_4, %c0_5] : memref<8x512xf32, #tpu.memory_space<vmem>>, vector<4x256xf32>
    tpu.vector_store %arg6[%c0_4, %c0_5], %4 {strides = array<i32>} : memref<8x512xf32, #tpu.memory_space<vmem>>, vector<4x256xf32>,
    %c1 = arith.constant 1 : index
    %c0_6 = arith.constant 0 : index
    %c0_7 = arith.constant 0 : index
    %6 = vector.load %arg1[%c1, %c0_6, %c0_7] : memref<2x4x256xbf16, #tpu.memory_space<vmem>>, vector<1x4x256xbf16>
    %7 = vector.shape_cast %6 : vector<1x4x256xbf16> to vector<4x256xbf16>
    %8 = arith.extf %7 : vector<4x256xbf16> to vector<4x256xf32>
    %c0_8 = arith.constant 0 : index
    %c256 = arith.constant 256 : index
    %9 = vector.load %arg6[%c0_8, %c256] : memref<8x512xf32, #tpu.memory_space<vmem>>, vector<4x256xf32>
    tpu.vector_store %arg6[%c0_8, %c256], %8 {strides = array<i32>} : memref<8x512xf32, #tpu.memory_space<vmem>>, vector<4x256xf32>,
    %c0_9 = arith.constant 0 : index
    %c0_10 = arith.constant 0 : index
    %10 = vector.load %arg6[%c0_9, %c0_10] : memref<8x512xf32, #tpu.memory_space<vmem>>, vector<8x512xf32>
    %11 = arith.truncf %10 : vector<8x512xf32> to vector<8x512xbf16>
    %c0_11 = arith.constant 0 : index
    %c0_12 = arith.constant 0 : index
    %12 = vector.load %arg2[%c0_11, %c0_12] : memref<8x8xbf16, #tpu.memory_space<vmem>>, vector<8x8xbf16>
    %cst_13 = arith.constant dense<0.000000e+00> : vector<8x512xf32>
    %13 = tpu.matmul %12, %11, %cst_13 {dimension_numbers = #tpu.dot_dimension_numbers<[1], [0], [0], [1], [0, 0, 1, 1], [], []>} : vector<8x8xbf16>, vector<8x512xbf16>, vector<8x512xf32> -> vector<8x512xf32>
    %c0_14 = arith.constant 0 : index
    %c0_15 = arith.constant 0 : index
    %14 = vector.load %arg3[%c0_14, %c0_15] : memref<8x1xf32, #tpu.memory_space<vmem>>, vector<8x1xf32>
    %15 = vector.broadcast %14 : vector<8x1xf32> to vector<8x512xf32>
    %16 = arith.addf %13, %15 : vector<8x512xf32>
    %17 = arith.negf %16 : vector<8x512xf32>
    %18 = math.exp %17 : vector<8x512xf32>
    %cst_16 = arith.constant 1.000000e+00 : f32
    %19 = vector.broadcast %cst_16 : f32 to vector<8x512xf32>
    %20 = arith.addf %19, %18 : vector<8x512xf32>
    %21 = arith.divf %19, %20 : vector<8x512xf32>
    %22 = arith.mulf %16, %21 : vector<8x512xf32>
    %23 = vector.extract_strided_slice %22 {offsets = [0, 0], sizes = [8, 256], strides = [1, 1]} : vector<8x512xf32> to vector<8x256xf32>
    %c0_17 = arith.constant 0 : index
    %c0_18 = arith.constant 0 : index
    %c0_19 = arith.constant 0 : index
    %24 = vector.load %arg5[%c0_17, %c0_18, %c0_19] : memref<2x8x256xf32, #tpu.memory_space<vmem>>, vector<1x8x256xf32>
    %25 = vector.shape_cast %24 : vector<1x8x256xf32> to vector<8x256xf32>
    %26 = vector.shape_cast %23 : vector<8x256xf32> to vector<1x8x256xf32>
    tpu.vector_store %arg5[%c0_17, %c0_18, %c0_19], %26 {strides = array<i32>} : memref<2x8x256xf32, #tpu.memory_space<vmem>>, vector<1x8x256xf32>,
    %27 = vector.extract_strided_slice %22 {offsets = [0, 256], sizes = [8, 256], strides = [1, 1]} : vector<8x512xf32> to vector<8x256xf32>
    %c1_20 = arith.constant 1 : index
    %c0_21 = arith.constant 0 : index
    %c0_22 = arith.constant 0 : index
    %28 = vector.load %arg5[%c1_20, %c0_21, %c0_22] : memref<2x8x256xf32, #tpu.memory_space<vmem>>, vector<1x8x256xf32>
    %29 = vector.shape_cast %28 : vector<1x8x256xf32> to vector<8x256xf32>
    %30 = vector.shape_cast %27 : vector<8x256xf32> to vector<1x8x256xf32>
    tpu.vector_store %arg5[%c1_20, %c0_21, %c0_22], %30 {strides = array<i32>} : memref<2x8x256xf32, #tpu.memory_space<vmem>>, vector<1x8x256xf32>,
    return
  }
  func.func @transform_0(%arg0: i32) -> (i32, i32, i32) {
    %c0_i32 = arith.constant 0 : i32
    %c0_i32_0 = arith.constant 0 : i32
    %c0_i32_1 = arith.constant 0 : i32
    return %arg0, %c0_i32, %c0_i32_0 : i32, i32, i32
  }
  func.func @transform_1(%arg0: i32) -> (i32, i32) {
    %c0_i32 = arith.constant 0 : i32
    %c0_i32_0 = arith.constant 0 : i32
    %c0_i32_1 = arith.constant 0 : i32
    return %c0_i32, %c0_i32_0 : i32, i32
  }
  func.func @transform_2(%arg0: i32) -> (i32, i32) {
    %c0_i32 = arith.constant 0 : i32
    %c0_i32_0 = arith.constant 0 : i32
    %c0_i32_1 = arith.constant 0 : i32
    return %c0_i32, %c0_i32_0 : i32, i32
  }
  func.func @transform_3(%arg0: i32) -> (i32, i32) {
    %c0_i32 = arith.constant 0 : i32
    %c0_i32_0 = arith.constant 0 : i32
    %c0_i32_1 = arith.constant 0 : i32
    return %c0_i32, %c0_i32_0 : i32, i32
  }
  func.func @transform_4(%arg0: i32) -> (i32, i32, i32) {
    %c0_i32 = arith.constant 0 : i32
    %c0_i32_0 = arith.constant 0 : i32
    %c0_i32_1 = arith.constant 0 : i32
    return %arg0, %c0_i32, %c0_i32_0 : i32, i32, i32
  }
}

</mosaic_0001>

<llo_original>
// kernel: tpu_custom_call.1
$region0: #{tpu_custom_call.1}
  #allocation0 [shape = 'u32[]', space=smem, size = 0x4, offset = 0x4, fixed_abs, tag = 'smem constant byte address 0x4 - core index']
  #allocation1 [shape = 'u32[144,128]{1,0:T(1,128)}', space=vmem, size = 0x12000, scoped, tag = 'internal scratch']
  #allocation2 [shape = 'f32[8,512]{1,0:T(8,128)}', space=vmem, size = 0x4000, scoped, tag = 'scratch operand']
  %s0 = inlined_call_operand.vmem [shape: bf16[2,4,256], index: 0, kind: input, shape index: {}]
  %s1 = inlined_call_operand.vmem [shape: bf16[8,8], index: 1, kind: input, shape index: {}]
  %s2 = inlined_call_operand.vmem [shape: f32[8,1], index: 2, kind: input, shape index: {}]
  %s3 = inlined_call_operand.vmem [shape: f32[1,256], index: 3, kind: input, shape index: {}]
  %s4 = inlined_call_operand.hbm [shape: f32[2,8,256], index: 4, kind: output, shape index: {}]
  %s5 = sld [smem:[#allocation0]]
  $region26: #{tpu_custom_call.1} parent=0
    _
  %s7 = ssub.s32 1, %s5
  %s8 = scalar_select 0, %s7, %s5
  $region1: #{tpu_custom_call.1} parent=0
    #allocation3 [shape = 'u8[16384]{0}', space=vmem, size = 0x4000, scoped, tag = 'output window, operand 0, single buffered']
    #allocation4 [shape = 's32[1]{0}', space=sflag, size = 0x4, scoped, tag = 'scoped memory for tpu_custom_call.1']
    %9 = vsyncpa [#allocation4], 0
    // Predicated region
    $region2: #{tpu_custom_call.1} parent=1 // pred_check
      _
    $region3: #{tpu_custom_call.1} parent=1 // pred_check_branch
      %11 = sbr.rel (0) target = $region5
    $region4: #{tpu_custom_call.1} parent=1 // pred_region
      _
    $region5: #{tpu_custom_call.1} parent=1 // pred_fallthru
      _
    // Predicated region
    $region6: #{tpu_custom_call.1} parent=1 // pred_check
      _
    $region7: #{tpu_custom_call.1} parent=1 // pred_check_branch
      %13 = sbr.rel (0) target = $region9
    $region8: #{tpu_custom_call.1} parent=1 // pred_region
      _
    $region9: #{tpu_custom_call.1} parent=1 // pred_fallthru
      _
    // Predicated region
    $region10: #{tpu_custom_call.1} parent=1 // pred_check
      _
    $region11: #{tpu_custom_call.1} parent=1 // pred_check_branch
      %15 = sbr.rel (0) target = $region13
    $region12: #{tpu_custom_call.1} parent=1 // pred_region
      _
    $region13: #{tpu_custom_call.1} parent=1 // pred_fallthru
      _
    // Predicated region
    $region14: #{tpu_custom_call.1} parent=1 // pred_check
      _
    $region15: #{tpu_custom_call.1} parent=1 // pred_check_branch
      %17 = sbr.rel (0) target = $region17
    $region16: #{tpu_custom_call.1} parent=1 // pred_region
      _
    $region17: #{tpu_custom_call.1} parent=1 // pred_fallthru
      _
    %19 = vst [vmem:[#allocation2] sm:$0xff] 0.0
    %20 = vst [vmem:[#allocation2 + $0x8] sm:$0xff] 0.0
    %21 = vst [vmem:[#allocation2 + $0x10] sm:$0xff] 0.0
    %22 = vst [vmem:[#allocation2 + $0x18] sm:$0xff] 0.0
    %v23 = vld [vmem:[%s0] sm:$0xf]
    %v24 = vunpack.c.l.bf16 %v23
    %v26 = vcombine.high %v24, %v24
    %28 = vst [vmem:[#allocation2] sm:$0xf] %v24
    %29 = vst [vmem:[#allocation2 + $0x8] sm:$0xf] %v26
    %s30 = scalar_lea.vmem %s0, 4
    %v31 = vld [vmem:[%s30] sm:$0xf]
    %v32 = vunpack.c.l.bf16 %v31
    %v34 = vcombine.high %v32, %v32
    %36 = vst [vmem:[#allocation2 + $0x10] sm:$0xf] %v32
    %37 = vst [vmem:[#allocation2 + $0x18] sm:$0xf] %v34
    %v38 = vld [vmem:[#allocation2] sm:$0xff]
    %v39 = vld [vmem:[#allocation2 + $0x8] sm:$0xff]
    %v40 = vld [vmem:[#allocation2 + $0x10] sm:$0xff]
    %v41 = vld [vmem:[#allocation2 + $0x18] sm:$0xff]
    %v42 = vpack.c.bf16 %v38, %v38
    %v43 = vpack.c.bf16 %v39, %v39
    %v44 = vpack.c.bf16 %v40, %v40
    %v45 = vpack.c.bf16 %v41, %v41
    %v46 = vld [vmem:[%s1] sm:$0xf]
    %v47 = vld [vmem:[%s2] sm:$0xff]
    %49 = vset.pattern.permute.xlu0 0
    %50 = vperm.xlu0 %49, %v47
    %v51 = vpop.permute.xlu0 %50
    %vm53 = vcmask 64512
    %v55 = vsel %vm53, %v46, 0
    %vm57 = vcmask 1043456
    %v59 = vsel %vm57, %v42, 0
    %v62 = vsel %vm57, %v43, 0
    %v65 = vsel %vm57, %v44, 0
    %v68 = vsel %vm57, %v45, 0
    %70 = vmatprep.subr.bf16.mxu0 %v62
    %71 = vmatpush1.bf16.msra.mxu0 %v59
    %72 = vmatprep.subr.bf16.mxu0 0
    %73 = vmatpush1.bf16.msra.mxu0 0
    %74 = vmatprep.subr.bf16.mxu0 0
    %75 = vmatpush1.bf16.msra.mxu0 0
    %76 = vmatprep.subr.bf16.mxu0 0
    %77 = vmatpush1.bf16.msra.mxu0 0
    %78 = vmatprep.subr.bf16.mxu0 0
    %79 = vmatpush1.bf16.msra.mxu0 0
    %80 = vmatprep.subr.bf16.mxu0 0
    %81 = vmatpush1.bf16.msra.mxu0 0
    %82 = vmatprep.subr.bf16.mxu0 0
    %83 = vmatpush1.bf16.msra.mxu0 0
    %84 = vmatprep.subr.bf16.mxu0 0
    %85 = vmatpush1.bf16.msra.mxu0 0
    %86 = vmatprep.subr.bf16.mxu0 0
    %87 = vmatpush1.bf16.msra.mxu0 0
    %88 = vmatprep.subr.bf16.mxu0 0
    %89 = vmatpush1.bf16.msra.mxu0 0
    %90 = vmatprep.subr.bf16.mxu0 0
    %91 = vmatpush1.bf16.msra.mxu0 0
    %92 = vmatprep.subr.bf16.mxu0 0
    %93 = vmatpush1.bf16.msra.mxu0 0
    %94 = vmatprep.subr.bf16.mxu0 0
    %95 = vmatpush1.bf16.msra.mxu0 0
    %96 = vmatprep.subr.bf16.mxu0 0
    %97 = vmatpush1.bf16.msra.mxu0 0
    %98 = vmatprep.subr.bf16.mxu0 0
    %99 = vmatpush1.bf16.msra.mxu0 0
    %100 = vmatprep.subr.bf16.mxu0 0
    %101 = vmatpush1.bf16.msra.mxu0 0
    %102 = vmatprep.mubr.bf16.mxu0 0
    %103 = vmatmul.mubr.bf16.gmra.mrb[0].mxu0 %v55
    %v104 = vpop.f32.mrb[0].mxu0
    %v105 = vadd.f32 %v51, %v104
    %v106 = vpop.f32.mrb[0].mxu0
    %v107 = vadd.f32 %v51, %v106
    %v108 = vpop.f32.mrb[0].mxu0
    %v109 = vpop.f32.mrb[0].mxu0
    %110 = vdwg.mxu0
    %111 = vmatprep.subr.bf16.mxu0 %v68
    %112 = vmatpush1.bf16.msra.mxu0 %v65
    %113 = vmatprep.subr.bf16.mxu0 0
    %114 = vmatpush1.bf16.msra.mxu0 0
    %115 = vmatprep.subr.bf16.mxu0 0
    %116 = vmatpush1.bf16.msra.mxu0 0
    %117 = vmatprep.subr.bf16.mxu0 0
    %118 = vmatpush1.bf16.msra.mxu0 0
    %119 = vmatprep.subr.bf16.mxu0 0
    %120 = vmatpush1.bf16.msra.mxu0 0
    %121 = vmatprep.subr.bf16.mxu0 0
    %122 = vmatpush1.bf16.msra.mxu0 0
    %123 = vmatprep.subr.bf16.mxu0 0
    %124 = vmatpush1.bf16.msra.mxu0 0
    %125 = vmatprep.subr.bf16.mxu0 0
    %126 = vmatpush1.bf16.msra.mxu0 0
    %127 = vmatprep.subr.bf16.mxu0 0
    %128 = vmatpush1.bf16.msra.mxu0 0
    %129 = vmatprep.subr.bf16.mxu0 0
    %130 = vmatpush1.bf16.msra.mxu0 0
    %131 = vmatprep.subr.bf16.mxu0 0
    %132 = vmatpush1.bf16.msra.mxu0 0
    %133 = vmatprep.subr.bf16.mxu0 0
    %134 = vmatpush1.bf16.msra.mxu0 0
    %135 = vmatprep.subr.bf16.mxu0 0
    %136 = vmatpush1.bf16.msra.mxu0 0
    %137 = vmatprep.subr.bf16.mxu0 0
    %138 = vmatpush1.bf16.msra.mxu0 0
    %139 = vmatprep.subr.bf16.mxu0 0
    %140 = vmatpush1.bf16.msra.mxu0 0
    %141 = vmatprep.subr.bf16.mxu0 0
    %142 = vmatpush1.bf16.msra.mxu0 0
    %143 = vmatprep.mubr.bf16.mxu0 0
    %144 = vmatmul.mubr.bf16.gmra.mrb[0].mxu0 %v55
    %v145 = vpop.f32.mrb[0].mxu0
    %v146 = vadd.f32 %v51, %v145
    %v147 = vpop.f32.mrb[0].mxu0
    %v148 = vadd.f32 %v51, %v147
    %v149 = vpop.f32.mrb[0].mxu0
    %v150 = vpop.f32.mrb[0].mxu0
    %151 = vdwg.mxu0
    %v152 = vxor.u32 %v105, 2147483648
    %v153 = vxor.u32 %v107, 2147483648
    %v154 = vxor.u32 %v146, 2147483648
    %v155 = vxor.u32 %v148, 2147483648
    %v156 = vmul.f32 %v152, 1.442695
    %v157 = vpow.pop %v156
    %v158 = vmul.f32 %v153, 1.442695
    %v159 = vpow.pop %v158
    %v160 = vmul.f32 %v154, 1.442695
    %v161 = vpow.pop %v160
    %v162 = vmul.f32 %v155, 1.442695
    %v163 = vpow.pop %v162
    %v164 = vadd.f32 %v157, 1.0
    %v165 = vadd.f32 %v159, 1.0
    %v166 = vadd.f32 %v161, 1.0
    %v167 = vadd.f32 %v163, 1.0
    %v168 = vrcp.pop %v164
    %v169 = vmul.f32 1.0, %v168
    %v170 = vrcp.pop %v165
    %v171 = vmul.f32 1.0, %v170
    %v172 = vrcp.pop %v166
    %v173 = vmul.f32 1.0, %v172
    %v174 = vrcp.pop %v167
    %v175 = vmul.f32 1.0, %v174
    %v176 = vmul.f32 %v105, %v169
    %v177 = vmul.f32 %v107, %v171
    %v178 = vmul.f32 %v146, %v173
    %v179 = vmul.f32 %v148, %v175
    %180 = vst [vmem:[#allocation3] sm:$0xff] %v176
    %181 = vst [vmem:[#allocation3 + $0x8] sm:$0xff] %v177
    %s182 = scalar_lea.vmem [#allocation3], 16
    %183 = vst [vmem:[%s182] sm:$0xff] %v178
    %184 = vst [vmem:[%s182 + $0x8] sm:$0xff] %v179
    // Predicated region
    $region18: #{tpu_custom_call.1} parent=1 // pred_check
      _
    $region19: #{tpu_custom_call.1} parent=1 // pred_check_branch
      %186 = sbr.rel (0) target = $region21
    $region20: #{tpu_custom_call.1} parent=1 // pred_region
      %s188 = ssub.s32 512, 512
      %189 = vsyncadd [#allocation4], %s188
      %s190 = sshll.u32 [#allocation3], 4
      %s191 = int_to_ptr.vmem [resolvable:$true] %s190
      %196 = dma.vmem_to_hbm [thread:$0]  %s191, 512, %s4, [#allocation4], 256, 256, 16
    $region21: #{tpu_custom_call.1} parent=1 // pred_fallthru
      _
    // Predicated region
    $region22: #{tpu_custom_call.1} parent=1 // pred_check
      _
    $region23: #{tpu_custom_call.1} parent=1 // pred_check_branch
      %198 = sbr.rel (0) target = $region25
    $region24: #{tpu_custom_call.1} parent=1 // pred_region
      %199 = dma.done [#allocation4], 512
    $region25: #{tpu_custom_call.1} parent=1 // pred_fallthru
      _
    %200 = vsyncpa [#allocation4], 1

</llo_original>
